<compile_context>
chip_gen: v5e
topology: v5e:2x2
jax: 0.10.0
libtpu: 0.0.40
codegen_flags: <defaults>
</compile_context>

<pallas_src>
import functools

import jax
import jax.numpy as jnp
from jax.experimental import pallas as pl
from jax.experimental.pallas import tpu as pltpu


def _round_up(x: int, m: int) -> int:
    return ((x + m - 1) // m) * m


def _choose_batch_tile(batch: int, block_rows: int, mult: int) -> int:
    """Pick the batch tile size.

    - Single tile if the whole batch fits under block_rows.
    - Otherwise split into an EVEN number of tiles (balanced across the two
      v7x TensorCores via dimension_semantics=("parallel",)), each rounded up
      to the sublane multiple.
    """
    if batch <= block_rows:
        return _round_up(batch, mult)
    num_tiles = -(-batch // block_rows)
    if num_tiles % 2:
        num_tiles += 1
    return _round_up(-(-batch // num_tiles), mult)


def _base_logistic_kernel(x_ref, wt_ref, b_ref, o_ref):
    # x_ref:  (TB, D_in)    current batch tile (may include undefined tail rows
    #                       on the last, partial grid step — rows independent).
    # wt_ref: (D_in, D_out) pre-transposed f32 weight, VMEM-resident.
    # b_ref:  (1, D_out)    f32 bias row, VMEM-resident.
    # o_ref:  (TB, D_out)
    y = jnp.dot(x_ref[...], wt_ref[...], preferred_element_type=jnp.float32)
    y = y + b_ref[...]                     # broadcast (1, D_out) over rows, f32
    y = jnp.maximum(y, 0.0)                # ReLU
    # flatten(start_dim=1) on a 2-D tensor is identity.
    o_ref[...] = y.astype(o_ref.dtype)


@functools.partial(jax.jit, static_argnames=("block_rows",))
def base_logistic_forward(x, w, b, *, block_rows: int = 8192):
    """relu(x @ w.T + b) with a batch-tiled Pallas call.

    x: (B, D_in)          float32 or bfloat16 (bf16 halves HBM traffic)
    w: (D_out, D_in)      PyTorch nn.Linear weight layout (kept in f32)
    b: (D_out,)           kept in f32
    returns: (B, D_out) in x.dtype
    """
    B, D_in = x.shape
    D_out = w.shape[0]

    # One-time layout work in XLA (outside the kernel): transpose W, 2-D bias.
    # Do NOT downcast the weights/bias to x.dtype — keep them f32.
    wt = jnp.transpose(w)                              # (D_in, D_out), f32
    b2d = b.reshape(1, D_out).astype(jnp.float32)      # (1, D_out),    f32

    # Sublane multiple: bf16 packs 16 rows/vreg, f32 packs 8.
    mult = 16 if x.dtype == jnp.bfloat16 else 8
    tb = _choose_batch_tile(B, block_rows, mult)
    num_tiles = -(-B // tb)

    out = pl.pallas_call(
        _base_logistic_kernel,
        out_shape=jax.ShapeDtypeStruct((B, D_out), x.dtype),
        grid_spec=pl.GridSpec(
            grid=(num_tiles,),
            in_specs=[
                # x: one batch tile per grid step (last block may be partial;
                # Pallas masks the out-of-bounds rows on store).
                pl.BlockSpec((tb, D_in), lambda i: (i, 0)),
                # W.T and bias: full-array blocks, constant index -> VMEM-resident.
                pl.BlockSpec((D_in, D_out), lambda i: (0, 0)),
                pl.BlockSpec((1, D_out), lambda i: (0, 0)),
            ],
            out_specs=pl.BlockSpec((tb, D_out), lambda i: (i, 0)),
        ),
        compiler_params=pltpu.CompilerParams(
            dimension_semantics=("parallel",),
            # Double-buffered (tb,13)->(tb,128) in + (tb,10)->(tb,128) out at
            # tb=8192 f32 is ~16 MiB; leave headroom but stay under v7x's
            # 64 MiB physical VMEM (v5e scoped default is only 16 MiB).
            vmem_limit_bytes=48 << 20,
        ),
    )(x, wt, b2d)

    return out


if __name__ == "__main__":
    key = jax.random.PRNGKey(0)
    k_x, k_w, k_b, k_x2 = jax.random.split(key, 4)

    input_dim = 13
    out_dim = 10
    batch = 8

    # Deterministic parameter init mimicking nn.Linear default:
    # uniform(-1/sqrt(fan_in), 1/sqrt(fan_in)).
    bound = 1.0 / (input_dim ** 0.5)
    w = jax.random.uniform(k_w, (out_dim, input_dim), jnp.float32, -bound, bound)
    b = jax.random.uniform(k_b, (out_dim,), jnp.float32, -bound, bound)

    # Small primary case (single tile, exact multiple of the sublane pack).
    x = jax.random.normal(k_x, (batch, input_dim), jnp.float32)
    out = jax.block_until_ready(base_logistic_forward(x, w, b))
    ref = jnp.maximum(x @ w.T + b, 0.0)
    assert out.shape == (batch, out_dim)
    assert jnp.allclose(out, ref, atol=1e-5, rtol=1e-5)

    # Small ragged case exercising the in-Pallas masked partial block
    # (no jnp.pad / output slice in the wrapper).
    batch2 = 21
    x2 = jax.random.normal(k_x2, (batch2, input_dim), jnp.float32)
    out2 = jax.block_until_ready(base_logistic_forward(x2, w, b))
    ref2 = jnp.maximum(x2 @ w.T + b, 0.0)
    assert out2.shape == (batch2, out_dim)
    assert jnp.allclose(out2, ref2, atol=1e-5, rtol=1e-5)

    print("KERNEL_OK")
</pallas_src>

<mosaic_0001>
module attributes {stable_mosaic.version = 11 : i64} {
  func.func @_base_logistic_kernel(%arg0: i32, %arg1: memref<8x13xf32, #tpu.memory_space<vmem>>, %arg2: memref<13x10xf32, #tpu.memory_space<vmem>>, %arg3: memref<1x10xf32, #tpu.memory_space<vmem>>, %arg4: memref<8x10xf32, #tpu.memory_space<vmem>>) attributes {dimension_semantics = [#tpu.dimension_semantics<parallel>], iteration_bounds = array<i64: 1>, scalar_prefetch = 0 : i64, scratch_operands = 0 : i64, tpu.core_type = #tpu.core_type<tc>, window_params = [{transform_indices = @transform_0, window_bounds = array<i64: 8, 13>}, {pipeline_mode = #tpu.pipeline_mode<synchronous>, transform_indices = @transform_1, window_bounds = array<i64: 13, 10>}, {pipeline_mode = #tpu.pipeline_mode<synchronous>, transform_indices = @transform_2, window_bounds = array<i64: 1, 10>}, {transform_indices = @transform_3, window_bounds = array<i64: 8, 10>}]} {
    %c0 = arith.constant 0 : index
    %c0_0 = arith.constant 0 : index
    %0 = vector.load %arg1[%c0, %c0_0] : memref<8x13xf32, #tpu.memory_space<vmem>>, vector<8x13xf32>
    %c0_1 = arith.constant 0 : index
    %c0_2 = arith.constant 0 : index
    %1 = vector.load %arg2[%c0_1, %c0_2] : memref<13x10xf32, #tpu.memory_space<vmem>>, vector<13x10xf32>
    %cst = arith.constant dense<0.000000e+00> : vector<8x10xf32>
    %2 = tpu.matmul %0, %1, %cst {dimension_numbers = #tpu.dot_dimension_numbers<[1], [0], [0], [1], [0, 0, 1, 1], [], []>} : vector<8x13xf32>, vector<13x10xf32>, vector<8x10xf32> -> vector<8x10xf32>
    %c0_3 = arith.constant 0 : index
    %c0_4 = arith.constant 0 : index
    %3 = vector.load %arg3[%c0_3, %c0_4] : memref<1x10xf32, #tpu.memory_space<vmem>>, vector<1x10xf32>
    %4 = vector.broadcast %3 : vector<1x10xf32> to vector<8x10xf32>
    %5 = arith.addf %2, %4 : vector<8x10xf32>
    %cst_5 = arith.constant 0.000000e+00 : f32
    %6 = vector.broadcast %cst_5 : f32 to vector<8x10xf32>
    %7 = arith.maximumf %5, %6 : vector<8x10xf32>
    %c0_6 = arith.constant 0 : index
    %c0_7 = arith.constant 0 : index
    %8 = vector.load %arg4[%c0_6, %c0_7] : memref<8x10xf32, #tpu.memory_space<vmem>>, vector<8x10xf32>
    tpu.vector_store %arg4[%c0_6, %c0_7], %7 {strides = array<i32>} : memref<8x10xf32, #tpu.memory_space<vmem>>, vector<8x10xf32>,
    return
  }
  func.func @transform_0(%arg0: i32) -> (i32, i32) {
    %c0_i32 = arith.constant 0 : i32
    %c0_i32_0 = arith.constant 0 : i32
    return %arg0, %c0_i32 : i32, i32
  }
  func.func @transform_1(%arg0: i32) -> (i32, i32) {
    %c0_i32 = arith.constant 0 : i32
    %c0_i32_0 = arith.constant 0 : i32
    %c0_i32_1 = arith.constant 0 : i32
    return %c0_i32, %c0_i32_0 : i32, i32
  }
  func.func @transform_2(%arg0: i32) -> (i32, i32) {
    %c0_i32 = arith.constant 0 : i32
    %c0_i32_0 = arith.constant 0 : i32
    %c0_i32_1 = arith.constant 0 : i32
    return %c0_i32, %c0_i32_0 : i32, i32
  }
  func.func @transform_3(%arg0: i32) -> (i32, i32) {
    %c0_i32 = arith.constant 0 : i32
    %c0_i32_0 = arith.constant 0 : i32
    return %arg0, %c0_i32 : i32, i32
  }
}

</mosaic_0001>

<llo_original>
// kernel: base_logistic_forward.1
$region0: #{base_logistic_forward.1}
  #allocation0 [shape = 'u32[]', space=smem, size = 0x4, offset = 0x4, fixed_abs, tag = 'smem constant byte address 0x4 - core index']
  #allocation1 [shape = 'u32[72,128]{1,0:T(1,128)}', space=vmem, size = 0x9000, scoped, tag = 'internal scratch']
  %s0 = inlined_call_operand.vmem [shape: f32[8,13], index: 0, kind: input, shape index: {}]
  %s1 = inlined_call_operand.vmem [shape: f32[13,10], index: 1, kind: input, shape index: {}]
  %s2 = inlined_call_operand.vmem [shape: f32[1,10], index: 2, kind: input, shape index: {}]
  %s3 = inlined_call_operand.hbm [shape: f32[8,10], index: 3, kind: output, shape index: {}]
  %s4 = sld [smem:[#allocation0]]
  $region22: #{base_logistic_forward.1} parent=0
    _
  %s6 = ssub.s32 1, %s4
  %s7 = scalar_select 0, %s6, %s4
  $region1: #{base_logistic_forward.1} parent=0
    #allocation2 [shape = 'u8[4096]{0}', space=vmem, size = 0x1000, scoped, tag = 'output window, operand 0, single buffered']
    #allocation3 [shape = 's32[1]{0}', space=sflag, size = 0x4, scoped, tag = 'scoped memory for base_logistic_forward.1']
    %8 = vsyncpa [#allocation3], 0
    // Predicated region
    $region2: #{base_logistic_forward.1} parent=1 // pred_check
      _
    $region3: #{base_logistic_forward.1} parent=1 // pred_check_branch
      %10 = sbr.rel (0) target = $region5
    $region4: #{base_logistic_forward.1} parent=1 // pred_region
      _
    $region5: #{base_logistic_forward.1} parent=1 // pred_fallthru
      _
    // Predicated region
    $region6: #{base_logistic_forward.1} parent=1 // pred_check
      _
    $region7: #{base_logistic_forward.1} parent=1 // pred_check_branch
      %12 = sbr.rel (0) target = $region9
    $region8: #{base_logistic_forward.1} parent=1 // pred_region
      _
    $region9: #{base_logistic_forward.1} parent=1 // pred_fallthru
      _
    // Predicated region
    $region10: #{base_logistic_forward.1} parent=1 // pred_check
      _
    $region11: #{base_logistic_forward.1} parent=1 // pred_check_branch
      %14 = sbr.rel (0) target = $region13
    $region12: #{base_logistic_forward.1} parent=1 // pred_region
      _
    $region13: #{base_logistic_forward.1} parent=1 // pred_fallthru
      _
    %v15 = vld [vmem:[%s0] sm:$0xff]
    %v16 = vld [vmem:[%s1] sm:$0xff]
    %v17 = vld [vmem:[%s1 + $0x8] sm:$0x1f]
    %v18 = vld [vmem:[%s2] sm:$0x1]
    %v20 = vperm.slane %v18, 0
    %vm22 = vcmask 105472
    %v24 = vsel %vm22, %v15, 0
    %vm26 = vcmask 1044480
    %v28 = vsel %vm26, %v17, 0
    %30 = vmatpush.msra.mxu0 0.0
    %31 = vmatpush.msra.mxu0 0.0
    %32 = vmatpush.msra.mxu0 0.0
    %33 = vmatpush.msra.mxu0 0.0
    %34 = vmatpush.msra.mxu0 0.0
    %35 = vmatpush.msra.mxu0 0.0
    %36 = vmatpush.msra.mxu0 0.0
    %37 = vmatpush.msra.mxu0 0.0
    %38 = vmatpush.msra.mxu0 0.0
    %39 = vmatpush.msra.mxu0 0.0
    %40 = vmatpush.msra.mxu0 0.0
    %41 = vmatpush.msra.mxu0 0.0
    %42 = vmatpush.msra.mxu0 0.0
    %43 = vmatpush.msra.mxu0 0.0
    %44 = vmatpush.msra.mxu0 %v28
    %45 = vmatpush.msra.mxu0 %v16
    %46 = vmatmul.f32.gmra.mxu0 %v24
    %v47 = vpop.f32.mrf.mxu0
    %v48 = vadd.f32 %v20, %v47
    %49 = vdwg.mxu0
    %v50 = vmax.f32 %v48, 0.0
    %vm51 = vcmask 80896
    %52 = vst.msk [vmem:[#allocation2] sm:$0xff] %vm51, %v50
    // Predicated region
    $region14: #{base_logistic_forward.1} parent=1 // pred_check
      _
    $region15: #{base_logistic_forward.1} parent=1 // pred_check_branch
      %54 = sbr.rel (0) target = $region17
    $region16: #{base_logistic_forward.1} parent=1 // pred_region
      %56 = vsyncadd [#allocation3], 0
      %s58 = sshll.u32 [#allocation2], 4
      %s59 = int_to_ptr.vmem [resolvable:$true] %s58
      %s60 = sshll.u32 %s3, 4
      %s61 = int_to_ptr.hbm [resolvable:$true] %s60
      %63 = dma.vmem_to_hbm [thread:$0]  %s59, 128, %s61, [#allocation3]
    $region17: #{base_logistic_forward.1} parent=1 // pred_fallthru
      _
    // Predicated region
    $region18: #{base_logistic_forward.1} parent=1 // pred_check
      _
    $region19: #{base_logistic_forward.1} parent=1 // pred_check_branch
      %65 = sbr.rel (0) target = $region21
    $region20: #{base_logistic_forward.1} parent=1 // pred_region
      %67 = dma.done [#allocation3], 128
    $region21: #{base_logistic_forward.1} parent=1 // pred_fallthru
      _
    %68 = vsyncpa [#allocation3], 1

</llo_original>
